<compile_context>
chip_gen: v6e
topology: v6e:2x2x1
jax: 0.10.0
libtpu: 0.0.40
codegen_flags: <defaults>
</compile_context>

<pallas_src>
import functools

import jax
import jax.numpy as jnp
from jax.experimental import pallas as pl
from jax.experimental.pallas import tpu as pltpu


_PALLAS_MIN_BYTES = 256 * 1024  # below this the fused XLA path wins (fixed cost)


def _voting_kernel(x_ref, a_ref, o_ref, *, scale: float):
    # x_ref: (TN, L) lane-dense input tile (native dtype, no upcast)
    # a_ref: (L, C)  block-diagonal window-selection matrix (x.dtype)
    # o_ref: (TN, C) voted output tile
    acc = jnp.dot(x_ref[...], a_ref[...], preferred_element_type=jnp.float32)
    if scale != 1.0:            # static: only when 1/V is not folded into A
        acc = acc * scale
    o_ref[...] = acc.astype(o_ref.dtype)


def _vmem_capacity_bytes() -> int:
    try:
        return int(pltpu.get_tpu_info().vmem_capacity_bytes)
    except Exception:
        return 64 * 1024 * 1024  # conservative (v7x per-TC physical)


def _vmem_plan():
    """(tile budget, advertised scoped-VMEM limit), generation aware."""
    cap = _vmem_capacity_bytes()
    budget = min(cap // 3, 24 * 1024 * 1024)          # tiles + A + headroom
    limit = int(min(cap // 2, budget + 8 * 1024 * 1024))
    return budget, limit


def _choose_batch_tile(n, l, c, in_itemsize, out_itemsize, a_itemsize,
                       budget_bytes):
    """Largest batch tile whose double-buffered residents fit the budget."""
    fixed = 2 * l * c * a_itemsize                     # A (default 2 buffers)
    per_row = 2 * (l * in_itemsize + c * out_itemsize)  # dbl-buffered x + out
    tn = max(1, (budget_bytes - fixed) // per_row)
    if tn >= n:
        return int(n)                                  # full extent: always legal
    # Sublane alignment for the packed dtype: 8 rows (f32), 16 (bf16), 32 (i8).
    align = max(8, 32 // in_itemsize)
    tn = max(align, (tn // align) * align)
    return int(min(tn, n))


def voting_layer(x: jax.Array, voter_num: int, *, force_pallas=None) -> jax.Array:
    """Pallas implementation of VotingLayer.forward for a 2-D (N, L) input."""
    n, l = x.shape
    c = l // voter_num                   # AvgPool1d floors the output length
    if c == 0:
        return jnp.zeros((n, 0), dtype=x.dtype)
    l_used = c * voter_num

    orig_dtype = x.dtype
    if x.dtype not in (jnp.float32, jnp.bfloat16):
        x = x.astype(jnp.float32)        # keep the MXU path simple / exact

    budget, vmem_limit = _vmem_plan()
    a_resident = 2 * l * c * x.dtype.itemsize
    too_small = n * l * x.dtype.itemsize < _PALLAS_MIN_BYTES
    a_too_big = a_resident > budget // 2

    use_pallas = (not too_small) if force_pallas is None else bool(force_pallas)
    if a_too_big or not use_pallas:
        # Fused XLA fallback (also covers the huge-L case; see TODO above).
        out = x[:, :l_used].reshape(n, c, voter_num).mean(axis=-1)
        return out.astype(orig_dtype)

    inv_v = 1.0 / float(voter_num)

    # Block-diagonal selection: A[c*V + v, c] = 1; rows of the trailing partial
    # window map to column index C (out of range) so they are naturally zero.
    rows = jnp.arange(l, dtype=jnp.int32) // voter_num
    cols = jnp.arange(c, dtype=jnp.int32)
    mask = rows[:, None] == cols[None, :]
    if x.dtype == jnp.float32:
        a = mask.astype(jnp.float32) * inv_v   # fold 1/V into A (f32 only)
        scale = 1.0
    else:
        a = mask.astype(x.dtype)               # exact 0/1 in bf16
        scale = inv_v                          # scale in f32 inside the kernel

    tn = _choose_batch_tile(n, l, c, x.dtype.itemsize, x.dtype.itemsize,
                            a.dtype.itemsize, budget)
    grid = (pl.cdiv(n, tn),)

    kernel = functools.partial(_voting_kernel, scale=scale)

    cost = pl.CostEstimate(
        flops=2 * n * l * c,
        transcendentals=0,
        bytes_accessed=(n * l + n * c + l * c) * x.dtype.itemsize,
    )

    out = pl.pallas_call(
        kernel,
        out_shape=jax.ShapeDtypeStruct((n, c), x.dtype),
        grid=grid,
        in_specs=[
            pl.BlockSpec((tn, l), lambda i: (i, 0)),   # streamed batch tile
            pl.BlockSpec((l, c), lambda i: (0, 0)),    # resident A matrix
        ],
        out_specs=pl.BlockSpec((tn, c), lambda i: (i, 0)),
        compiler_params=pltpu.CompilerParams(
            dimension_semantics=("parallel",),
            vmem_limit_bytes=vmem_limit,
        ),
        cost_estimate=cost,
    )(x, a)
    return out.astype(orig_dtype)


if __name__ == "__main__":
    voter_num = 10
    key = jax.random.PRNGKey(0)
    k1, k2, k3, k4 = jax.random.split(key, 4)

    # Typical SNN head: 100 output neurons voting for 10 classes (Pallas path).
    x1 = jax.random.normal(k1, (4, 100), dtype=jnp.float32)
    out1 = jax.block_until_ready(voting_layer(x1, voter_num, force_pallas=True))
    ref1 = x1.reshape(4, 10, voter_num).mean(axis=-1)
    assert out1.shape == (4, 10)
    assert jnp.allclose(out1, ref1, atol=1e-5, rtol=1e-5)

    # Trailing partial window (dropped, like AvgPool1d), Pallas path.
    x2 = jax.random.normal(k2, (16, 103), dtype=jnp.float32)
    out2 = jax.block_until_ready(voting_layer(x2, voter_num, force_pallas=True))
    ref2 = x2[:, :100].reshape(16, 10, voter_num).mean(axis=-1)
    assert out2.shape == (16, 10)
    assert jnp.allclose(out2, ref2, atol=1e-5, rtol=1e-5)

    # bf16 input: native bf16 MXU matmul, f32 accumulation, scale in kernel.
    x3 = jax.random.normal(k3, (64, 250), dtype=jnp.bfloat16)
    out3 = jax.block_until_ready(voting_layer(x3, voter_num, force_pallas=True))
    ref3 = x3.astype(jnp.float32).reshape(64, 25, voter_num).mean(axis=-1)
    assert out3.shape == (64, 25)
    assert out3.dtype == jnp.bfloat16
    assert jnp.allclose(out3.astype(jnp.float32), ref3, atol=1e-2, rtol=1e-2)

    # Tiny problem: auto-dispatch takes the fused XLA fallback.
    x4 = jax.random.normal(k4, (8, 50), dtype=jnp.float32)
    out4 = jax.block_until_ready(voting_layer(x4, 5))
    ref4 = x4.reshape(8, 10, 5).mean(axis=-1)
    assert out4.shape == (8, 10)
    assert jnp.allclose(out4, ref4, atol=1e-5, rtol=1e-5)

    print("KERNEL_OK")
</pallas_src>

<mosaic_0001>
module attributes {stable_mosaic.version = 11 : i64} {
  func.func @_voting_kernel(%arg0: i32, %arg1: memref<4x100xf32, #tpu.memory_space<vmem>>, %arg2: memref<100x10xf32, #tpu.memory_space<vmem>>, %arg3: memref<4x10xf32, #tpu.memory_space<vmem>>) attributes {dimension_semantics = [#tpu.dimension_semantics<parallel>], iteration_bounds = array<i64: 1>, scalar_prefetch = 0 : i64, scratch_operands = 0 : i64, tpu.core_type = #tpu.core_type<tc>, window_params = [{transform_indices = @transform_0, window_bounds = array<i64: 4, 100>}, {pipeline_mode = #tpu.pipeline_mode<synchronous>, transform_indices = @transform_1, window_bounds = array<i64: 100, 10>}, {transform_indices = @transform_2, window_bounds = array<i64: 4, 10>}]} {
    %c0 = arith.constant 0 : index
    %c0_0 = arith.constant 0 : index
    %0 = vector.load %arg1[%c0, %c0_0] : memref<4x100xf32, #tpu.memory_space<vmem>>, vector<4x100xf32>
    %c0_1 = arith.constant 0 : index
    %c0_2 = arith.constant 0 : index
    %1 = vector.load %arg2[%c0_1, %c0_2] : memref<100x10xf32, #tpu.memory_space<vmem>>, vector<100x10xf32>
    %cst = arith.constant dense<0.000000e+00> : vector<4x10xf32>
    %2 = tpu.matmul %0, %1, %cst {dimension_numbers = #tpu.dot_dimension_numbers<[1], [0], [0], [1], [0, 0, 1, 1], [], []>} : vector<4x100xf32>, vector<100x10xf32>, vector<4x10xf32> -> vector<4x10xf32>
    %c0_3 = arith.constant 0 : index
    %c0_4 = arith.constant 0 : index
    %3 = vector.load %arg3[%c0_3, %c0_4] : memref<4x10xf32, #tpu.memory_space<vmem>>, vector<4x10xf32>
    tpu.vector_store %arg3[%c0_3, %c0_4], %2 {strides = array<i32>} : memref<4x10xf32, #tpu.memory_space<vmem>>, vector<4x10xf32>,
    return
  }
  func.func @transform_0(%arg0: i32) -> (i32, i32) {
    %c0_i32 = arith.constant 0 : i32
    %c0_i32_0 = arith.constant 0 : i32
    return %arg0, %c0_i32 : i32, i32
  }
  func.func @transform_1(%arg0: i32) -> (i32, i32) {
    %c0_i32 = arith.constant 0 : i32
    %c0_i32_0 = arith.constant 0 : i32
    %c0_i32_1 = arith.constant 0 : i32
    return %c0_i32, %c0_i32_0 : i32, i32
  }
  func.func @transform_2(%arg0: i32) -> (i32, i32) {
    %c0_i32 = arith.constant 0 : i32
    %c0_i32_0 = arith.constant 0 : i32
    return %arg0, %c0_i32 : i32, i32
  }
}

</mosaic_0001>

<llo_original>
// kernel: tpu_custom_call.1
$region0: #{tpu_custom_call.1}
  #allocation0 [shape = 'u32[]', space=smem, size = 0x4, offset = 0x4, fixed_abs, tag = 'smem constant byte address 0x4 - core index']
  #allocation1 [shape = 'u32[144,128]{1,0:T(1,128)}', space=vmem, size = 0x12000, scoped, tag = 'internal scratch']
  %s0 = inlined_call_operand.vmem [shape: f32[4,100], index: 0, kind: input, shape index: {}]
  %s1 = inlined_call_operand.vmem [shape: f32[100,10], index: 1, kind: input, shape index: {}]
  %s2 = inlined_call_operand.hbm [shape: f32[4,10], index: 2, kind: output, shape index: {}]
  %s3 = sld [smem:[#allocation0]]
  $region18: #{tpu_custom_call.1} parent=0
    _
  %s5 = ssub.s32 1, %s3
  %s6 = scalar_select 0, %s5, %s3
  $region1: #{tpu_custom_call.1} parent=0
    #allocation2 [shape = 'u8[2048]{0}', space=vmem, size = 0x800, scoped, tag = 'output window, operand 0, single buffered']
    #allocation3 [shape = 's32[1]{0}', space=sflag, size = 0x4, scoped, tag = 'scoped memory for tpu_custom_call.1']
    %7 = vsyncpa [#allocation3], 0
    // Predicated region
    $region2: #{tpu_custom_call.1} parent=1 // pred_check
      _
    $region3: #{tpu_custom_call.1} parent=1 // pred_check_branch
      %9 = sbr.rel (0) target = $region5
    $region4: #{tpu_custom_call.1} parent=1 // pred_region
      _
    $region5: #{tpu_custom_call.1} parent=1 // pred_fallthru
      _
    // Predicated region
    $region6: #{tpu_custom_call.1} parent=1 // pred_check
      _
    $region7: #{tpu_custom_call.1} parent=1 // pred_check_branch
      %11 = sbr.rel (0) target = $region9
    $region8: #{tpu_custom_call.1} parent=1 // pred_region
      _
    $region9: #{tpu_custom_call.1} parent=1 // pred_fallthru
      _
    %v12 = vld [vmem:[%s0] sm:$0xf]
    %v13 = vld [vmem:[%s1] sm:$0xff]
    %v14 = vld [vmem:[%s1 + $0x8] sm:$0xff]
    %v15 = vld [vmem:[%s1 + $0x10] sm:$0xff]
    %v16 = vld [vmem:[%s1 + $0x18] sm:$0xff]
    %v17 = vld [vmem:[%s1 + $0x20] sm:$0xff]
    %v18 = vld [vmem:[%s1 + $0x28] sm:$0xff]
    %v19 = vld [vmem:[%s1 + $0x30] sm:$0xff]
    %v20 = vld [vmem:[%s1 + $0x38] sm:$0xff]
    %v21 = vld [vmem:[%s1 + $0x40] sm:$0xff]
    %v22 = vld [vmem:[%s1 + $0x48] sm:$0xff]
    %v23 = vld [vmem:[%s1 + $0x50] sm:$0xff]
    %v24 = vld [vmem:[%s1 + $0x58] sm:$0xff]
    %v25 = vld [vmem:[%s1 + $0x60] sm:$0xf]
    %vm26 = vcmask 818176
    %v28 = vsel %vm26, %v12, 0
    %vm30 = vcmask 1043456
    %v32 = vsel %vm30, %v25, 0
    %34 = vmatprep.subr.mxu0 0.0
    %35 = vmatpush1.msra.mxu0 0.0
    %36 = vmatprep.subr.mxu0 0.0
    %37 = vmatpush1.msra.mxu0 0.0
    %38 = vmatprep.subr.mxu0 0.0
    %39 = vmatpush1.msra.mxu0 0.0
    %40 = vmatprep.subr.mxu0 0.0
    %41 = vmatpush1.msra.mxu0 %v32
    %42 = vmatprep.subr.mxu0 0.0
    %43 = vmatpush1.msra.mxu0 %v24
    %44 = vmatprep.subr.mxu0 0.0
    %45 = vmatpush1.msra.mxu0 %v23
    %46 = vmatprep.subr.mxu0 0.0
    %47 = vmatpush1.msra.mxu0 %v22
    %48 = vmatprep.subr.mxu0 0.0
    %49 = vmatpush1.msra.mxu0 %v21
    %50 = vmatprep.subr.mxu0 0.0
    %51 = vmatpush1.msra.mxu0 %v20
    %52 = vmatprep.subr.mxu0 0.0
    %53 = vmatpush1.msra.mxu0 %v19
    %54 = vmatprep.subr.mxu0 0.0
    %55 = vmatpush1.msra.mxu0 %v18
    %56 = vmatprep.subr.mxu0 0.0
    %57 = vmatpush1.msra.mxu0 %v17
    %58 = vmatprep.subr.mxu0 0.0
    %59 = vmatpush1.msra.mxu0 %v16
    %60 = vmatprep.subr.mxu0 0.0
    %61 = vmatpush1.msra.mxu0 %v15
    %62 = vmatprep.subr.mxu0 0.0
    %63 = vmatpush1.msra.mxu0 %v14
    %64 = vmatprep.subr.mxu0 0.0
    %65 = vmatpush1.msra.mxu0 %v13
    %66 = vmatprep.subr.mxu0 0.0
    %67 = vmatpush2.msra.mxu0 0.0
    %68 = vmatprep.subr.mxu0 0.0
    %69 = vmatpush2.msra.mxu0 0.0
    %70 = vmatprep.subr.mxu0 0.0
    %71 = vmatpush2.msra.mxu0 0.0
    %72 = vmatprep.subr.mxu0 0.0
    %73 = vmatpush2.msra.mxu0 0.0
    %74 = vmatprep.subr.mxu0 0.0
    %75 = vmatpush2.msra.mxu0 0.0
    %76 = vmatprep.subr.mxu0 0.0
    %77 = vmatpush2.msra.mxu0 0.0
    %78 = vmatprep.subr.mxu0 0.0
    %79 = vmatpush2.msra.mxu0 0.0
    %80 = vmatprep.subr.mxu0 0.0
    %81 = vmatpush2.msra.mxu0 0.0
    %82 = vmatprep.subr.mxu0 0.0
    %83 = vmatpush2.msra.mxu0 0.0
    %84 = vmatprep.subr.mxu0 0.0
    %85 = vmatpush2.msra.mxu0 0.0
    %86 = vmatprep.subr.mxu0 0.0
    %87 = vmatpush2.msra.mxu0 0.0
    %88 = vmatprep.subr.mxu0 0.0
    %89 = vmatpush2.msra.mxu0 0.0
    %90 = vmatprep.subr.mxu0 0.0
    %91 = vmatpush2.msra.mxu0 0.0
    %92 = vmatprep.subr.mxu0 0.0
    %93 = vmatpush2.msra.mxu0 0.0
    %94 = vmatprep.subr.mxu0 0.0
    %95 = vmatpush2.msra.mxu0 0.0
    %96 = vmatprep.subr.mxu0 0.0
    %97 = vmatpush2.msra.mxu0 0.0
    %98 = vmatprep.mubr.f32.mxu0 0.0
    %99 = vmatmul.mubr.f32.gmra.mxu0 %v28
    %v100 = vpop.f32.mrf.mxu0
    %v101 = vadd.f32 0.0, %v100
    %v102 = vpop.f32.mrf.mxu0
    %103 = vdwg.mxu0
    %vm104 = vcmask 76800
    %105 = vst.msk [vmem:[#allocation2] sm:$0xf] %vm104, %v101
    // Predicated region
    $region10: #{tpu_custom_call.1} parent=1 // pred_check
      _
    $region11: #{tpu_custom_call.1} parent=1 // pred_check_branch
      %107 = sbr.rel (0) target = $region13
    $region12: #{tpu_custom_call.1} parent=1 // pred_region
      %s109 = ssub.s32 64, 64
      %110 = vsyncadd [#allocation3], %s109
      %s112 = sshll.u32 [#allocation2], 4
      %s113 = int_to_ptr.vmem [resolvable:$true] %s112
      %115 = dma.vmem_to_hbm [thread:$0]  %s113, 64, %s2, [#allocation3]
    $region13: #{tpu_custom_call.1} parent=1 // pred_fallthru
      _
    // Predicated region
    $region14: #{tpu_custom_call.1} parent=1 // pred_check
      _
    $region15: #{tpu_custom_call.1} parent=1 // pred_check_branch
      %117 = sbr.rel (0) target = $region17
    $region16: #{tpu_custom_call.1} parent=1 // pred_region
      %118 = dma.done [#allocation3], 64
    $region17: #{tpu_custom_call.1} parent=1 // pred_fallthru
      _
    %119 = vsyncpa [#allocation3], 1

</llo_original>
